<compile_context>
chip_gen: v5e
topology: v5e:2x2
jax: 0.10.0
libtpu: 0.0.40
codegen_flags: <defaults>
</compile_context>

<pallas_src>
import numpy as np

import jax
import jax.numpy as jnp
from jax import lax
from jax.experimental import pallas as pl
from jax.experimental.pallas import tpu as pltpu

SELU_ALPHA = 1.6732632423543772
SELU_LAMBDA = 1.0507009873554805


def _selu(x):
    # SELU: lambda * (x if x > 0 else alpha*(exp(x)-1)); exp guarded for x>0.
    return SELU_LAMBDA * jnp.where(
        x > 0, x, SELU_ALPHA * (jnp.exp(jnp.minimum(x, 0.0)) - 1.0))


def _conv_block_kernel(lhs_ref, w_ref, s_ref, b_ref, o_ref):
    """One grid step: (rows_blk, K*Cin) @ (K*Cin, Cout_pad), then BN + SELU."""
    acc = jnp.dot(lhs_ref[...], w_ref[...], preferred_element_type=jnp.float32)
    y = acc * s_ref[...] + b_ref[...]            # BN (eval) scale/shift in f32
    o_ref[...] = _selu(y).astype(o_ref.dtype)


def _round_up(v, m):
    return -(-v // m) * m


def conv1d_block_pallas(x, params, *, stride=1, dilation=1, padding=0, groups=1,
                        compute_dtype=jnp.bfloat16, rows_target=512,
                        bn_eps=1e-5):
    """Conv1DBlock forward (eval mode). x: (N, Cin, L) -> (N, Cout, Lout)."""
    w = params["conv_w"]                      # (Cout, Cin // groups, K)
    b = params["conv_b"]                      # (Cout,)
    gamma, beta = params["bn_gamma"], params["bn_beta"]
    mean, var = params["bn_mean"], params["bn_var"]

    N, Cin, L = x.shape
    Cout, Cin_g, K = w.shape
    assert Cin % groups == 0 and Cout % groups == 0 and Cin_g == Cin // groups
    Lout = (L + 2 * padding - dilation * (K - 1) - 1) // stride + 1
    assert Lout > 0
    Kc = K * Cin

    # ---- BN (eval): y = scale * conv(x) + shift; applied in f32 post-matmul ---
    scale = (gamma / jnp.sqrt(var + bn_eps)).astype(jnp.float32)    # (Cout,)
    shift = (beta + scale * (b - mean)).astype(jnp.float32)         # (Cout,)

    # ---- flatten grouped conv weight to a dense (K*Cin, Cout) tap matrix ------
    # TODO(synk): for large `groups` (e.g. depthwise) this block-diagonal zero
    # expansion wastes (groups-1)/groups of the MXU; a per-group / VPU path
    # would be needed there.
    Cout_g = Cout // groups
    W = jnp.zeros((K, Cin, Cout), jnp.float32)
    for g in range(groups):                                         # traced once
        blk = w[g * Cout_g:(g + 1) * Cout_g].astype(jnp.float32)    # (Cout_g, Cin_g, K)
        W = W.at[:, g * Cin_g:(g + 1) * Cin_g,
                 g * Cout_g:(g + 1) * Cout_g].set(jnp.transpose(blk, (2, 1, 0)))
    W = W.reshape(Kc, Cout)

    # ---- lane-dense output channels -------------------------------------------
    Cout_pad = _round_up(max(Cout, 128), 128)
    if Cout_pad != Cout:
        W = jnp.pad(W, ((0, 0), (0, Cout_pad - Cout)))
        scale = jnp.pad(scale, (0, Cout_pad - Cout))
        shift = jnp.pad(shift, (0, Cout_pad - Cout))
    scale2d = scale.reshape(1, Cout_pad)
    shift2d = shift.reshape(1, Cout_pad)
    Wc = W.astype(compute_dtype)

    # ---- im2col unfold in the wrapper (one fused XLA copy) --------------------
    # lhs[n*Lout + l, k*Cin + c] = x_pad[n, c, l*stride + k*dilation]
    x_pad = jnp.pad(x, ((0, 0), (0, 0), (padding, padding)))        # (N, Cin, Lpad)
    span = (Lout - 1) * stride + 1
    taps = [lax.slice(x_pad, (0, 0, k * dilation),
                      (N, Cin, k * dilation + span), (1, 1, stride))
            for k in range(K)]                                      # each (N, Cin, Lout)
    lhs = jnp.stack(taps, axis=1)                                   # (N, K, Cin, Lout)
    lhs = jnp.transpose(lhs, (0, 3, 1, 2)).reshape(N * Lout, Kc)    # (rows, K*Cin)

    # ---- row tiling: large tiles, but keep >= 2 grid steps for megacore -------
    total_rows = N * Lout
    rows_blk = min(int(rows_target), max(8, -(-total_rows // 2)))
    rows_blk = _round_up(rows_blk, 8)
    rows_pad = _round_up(total_rows, rows_blk)
    if rows_pad != total_rows:
        lhs = jnp.pad(lhs, ((0, rows_pad - total_rows), (0, 0)))
    lhs = lhs.astype(compute_dtype)

    # ---- VMEM budget (lane/sublane padded, double-buffered blocks) ------------
    c_item = np.dtype(compute_dtype).itemsize
    o_item = np.dtype(x.dtype).itemsize
    est = (2 * rows_blk * _round_up(Kc, 128) * c_item       # lhs (2 buffers)
           + 2 * rows_blk * Cout_pad * o_item               # output (2 buffers)
           + 2 * _round_up(Kc, 8) * Cout_pad * c_item       # weight
           + 2 * 2 * 8 * Cout_pad * 4)                      # scale + shift
    vmem_limit = int(min(48 * 2 ** 20, max(4 * 2 ** 20, 4 * est)))

    out = pl.pallas_call(
        _conv_block_kernel,
        out_shape=jax.ShapeDtypeStruct((rows_pad, Cout_pad), x.dtype),
        grid=(rows_pad // rows_blk,),
        in_specs=[
            pl.BlockSpec((rows_blk, Kc), lambda r: (r, 0)),
            pl.BlockSpec((Kc, Cout_pad), lambda r: (0, 0)),
            pl.BlockSpec((1, Cout_pad), lambda r: (0, 0)),
            pl.BlockSpec((1, Cout_pad), lambda r: (0, 0)),
        ],
        out_specs=pl.BlockSpec((rows_blk, Cout_pad), lambda r: (r, 0)),
        compiler_params=pltpu.CompilerParams(
            dimension_semantics=("parallel",),
            vmem_limit_bytes=vmem_limit),
    )(lhs, Wc, scale2d, shift2d)

    # Back to the PyTorch (N, Cout, Lout) layout. (When chaining Conv1DBlocks,
    # the kernel-native (rows, Cout) layout could be carried forward instead.)
    out = out[:total_rows, :Cout].reshape(N, Lout, Cout)
    return jnp.transpose(out, (0, 2, 1))


# ----------------------------- pure-JAX reference ------------------------------
def _ref_forward(x, w, b, gamma, beta, mean, var, *, stride, dilation, padding,
                 groups, eps=1e-5):
    y = lax.conv_general_dilated(
        x.astype(jnp.float32), w.astype(jnp.float32),
        window_strides=(stride,), padding=[(padding, padding)],
        rhs_dilation=(dilation,),
        dimension_numbers=("NCH", "OIH", "NCH"),
        feature_group_count=groups)
    y = y + b[None, :, None]
    s = gamma / jnp.sqrt(var + eps)
    t = beta - mean * s
    y = y * s[None, :, None] + t[None, :, None]
    return _selu(y)


if __name__ == "__main__":
    key = jax.random.PRNGKey(0)

    def make_params(key, Cin, Cout, K, groups):
        ks = jax.random.split(key, 7)
        w = 0.2 * jax.random.normal(ks[0], (Cout, Cin // groups, K), jnp.float32)
        b = 0.1 * jax.random.normal(ks[1], (Cout,), jnp.float32)
        gamma = 1.0 + 0.1 * jax.random.normal(ks[2], (Cout,), jnp.float32)
        beta = 0.1 * jax.random.normal(ks[3], (Cout,), jnp.float32)
        mean = 0.05 * jax.random.normal(ks[4], (Cout,), jnp.float32)
        var = 1.0 + 0.1 * jnp.abs(jax.random.normal(ks[5], (Cout,), jnp.float32))
        return dict(conv_w=w, conv_b=b, bn_gamma=gamma, bn_beta=beta,
                    bn_mean=mean, bn_var=var), ks[6]

    # ---- Config 1: standard conv (groups=1), f32 operands ---------------------
    N, Cin, Cout, L, K = 4, 8, 16, 16, 3
    stride, dilation, padding, groups = 1, 1, 1, 1
    p1, key = make_params(key, Cin, Cout, K, groups)
    key, kx = jax.random.split(key)
    x1 = jax.random.normal(kx, (N, Cin, L), jnp.float32)

    out1 = conv1d_block_pallas(x1, p1, stride=stride, dilation=dilation,
                               padding=padding, groups=groups,
                               compute_dtype=jnp.float32)
    out1 = jax.block_until_ready(out1)
    ref1 = _ref_forward(x1, p1["conv_w"], p1["conv_b"], p1["bn_gamma"],
                        p1["bn_beta"], p1["bn_mean"], p1["bn_var"],
                        stride=stride, dilation=dilation, padding=padding,
                        groups=groups)
    assert out1.shape == ref1.shape
    assert jnp.allclose(out1, ref1, atol=2e-2, rtol=2e-2)

    # ---- Config 2: grouped + dilated conv, bf16 MXU operands ------------------
    N2, Cin2, Cout2, L2, K2 = 2, 8, 8, 16, 3
    stride2, dilation2, padding2, groups2 = 1, 2, 2, 2
    p2, key = make_params(key, Cin2, Cout2, K2, groups2)
    key, kx2 = jax.random.split(key)
    x2 = jax.random.normal(kx2, (N2, Cin2, L2), jnp.float32)

    out2 = conv1d_block_pallas(x2, p2, stride=stride2, dilation=dilation2,
                               padding=padding2, groups=groups2,
                               compute_dtype=jnp.bfloat16)
    out2 = jax.block_until_ready(out2)
    ref2 = _ref_forward(x2, p2["conv_w"], p2["conv_b"], p2["bn_gamma"],
                        p2["bn_beta"], p2["bn_mean"], p2["bn_var"],
                        stride=stride2, dilation=dilation2, padding=padding2,
                        groups=groups2)
    assert out2.shape == ref2.shape
    assert jnp.allclose(out2, ref2, atol=5e-2, rtol=5e-2)

    print("KERNEL_OK")
</pallas_src>

<mosaic_0001>
module attributes {stable_mosaic.version = 11 : i64} {
  func.func @_conv_block_kernel(%arg0: i32, %arg1: memref<32x24xf32, #tpu.memory_space<vmem>>, %arg2: memref<24x128xf32, #tpu.memory_space<vmem>>, %arg3: memref<1x128xf32, #tpu.memory_space<vmem>>, %arg4: memref<1x128xf32, #tpu.memory_space<vmem>>, %arg5: memref<32x128xf32, #tpu.memory_space<vmem>>) attributes {dimension_semantics = [#tpu.dimension_semantics<parallel>], iteration_bounds = array<i64: 2>, scalar_prefetch = 0 : i64, scratch_operands = 0 : i64, tpu.core_type = #tpu.core_type<tc>, window_params = [{transform_indices = @transform_0, window_bounds = array<i64: 32, 24>}, {pipeline_mode = #tpu.pipeline_mode<synchronous>, transform_indices = @transform_1, window_bounds = array<i64: 24, 128>}, {pipeline_mode = #tpu.pipeline_mode<synchronous>, transform_indices = @transform_2, window_bounds = array<i64: 1, 128>}, {pipeline_mode = #tpu.pipeline_mode<synchronous>, transform_indices = @transform_3, window_bounds = array<i64: 1, 128>}, {transform_indices = @transform_4, window_bounds = array<i64: 32, 128>}]} {
    %c0 = arith.constant 0 : index
    %c0_0 = arith.constant 0 : index
    %0 = vector.load %arg1[%c0, %c0_0] : memref<32x24xf32, #tpu.memory_space<vmem>>, vector<32x24xf32>
    %c0_1 = arith.constant 0 : index
    %c0_2 = arith.constant 0 : index
    %1 = vector.load %arg2[%c0_1, %c0_2] : memref<24x128xf32, #tpu.memory_space<vmem>>, vector<24x128xf32>
    %cst = arith.constant dense<0.000000e+00> : vector<32x128xf32>
    %2 = tpu.matmul %0, %1, %cst {dimension_numbers = #tpu.dot_dimension_numbers<[1], [0], [0], [1], [0, 0, 1, 1], [], []>} : vector<32x24xf32>, vector<24x128xf32>, vector<32x128xf32> -> vector<32x128xf32>
    %c0_3 = arith.constant 0 : index
    %c0_4 = arith.constant 0 : index
    %3 = vector.load %arg3[%c0_3, %c0_4] : memref<1x128xf32, #tpu.memory_space<vmem>>, vector<1x128xf32>
    %4 = vector.broadcast %3 : vector<1x128xf32> to vector<32x128xf32>
    %5 = arith.mulf %2, %4 : vector<32x128xf32>
    %c0_5 = arith.constant 0 : index
    %c0_6 = arith.constant 0 : index
    %6 = vector.load %arg4[%c0_5, %c0_6] : memref<1x128xf32, #tpu.memory_space<vmem>>, vector<1x128xf32>
    %7 = vector.broadcast %6 : vector<1x128xf32> to vector<32x128xf32>
    %8 = arith.addf %5, %7 : vector<32x128xf32>
    %cst_7 = arith.constant 0.000000e+00 : f32
    %9 = vector.broadcast %cst_7 : f32 to vector<32x128xf32>
    %10 = arith.cmpf ogt, %8, %9 : vector<32x128xf32>
    %cst_8 = arith.constant 0.000000e+00 : f32
    %11 = vector.broadcast %cst_8 : f32 to vector<32x128xf32>
    %12 = arith.minimumf %8, %11 : vector<32x128xf32>
    %13 = math.exp %12 : vector<32x128xf32>
    %cst_9 = arith.constant 1.000000e+00 : f32
    %14 = vector.broadcast %cst_9 : f32 to vector<32x128xf32>
    %15 = arith.subf %13, %14 : vector<32x128xf32>
    %cst_10 = arith.constant 1.67326319 : f32
    %16 = vector.broadcast %cst_10 : f32 to vector<32x128xf32>
    %17 = arith.mulf %16, %15 : vector<32x128xf32>
    %18 = arith.select %10, %8, %17 : vector<32x128xi1>, vector<32x128xf32>
    %cst_11 = arith.constant 1.05070102 : f32
    %19 = vector.broadcast %cst_11 : f32 to vector<32x128xf32>
    %20 = arith.mulf %19, %18 : vector<32x128xf32>
    %c0_12 = arith.constant 0 : index
    %c0_13 = arith.constant 0 : index
    %21 = vector.load %arg5[%c0_12, %c0_13] : memref<32x128xf32, #tpu.memory_space<vmem>>, vector<32x128xf32>
    tpu.vector_store %arg5[%c0_12, %c0_13], %20 {strides = array<i32>} : memref<32x128xf32, #tpu.memory_space<vmem>>, vector<32x128xf32>,
    return
  }
  func.func @transform_0(%arg0: i32) -> (i32, i32) {
    %c0_i32 = arith.constant 0 : i32
    %c0_i32_0 = arith.constant 0 : i32
    return %arg0, %c0_i32 : i32, i32
  }
  func.func @transform_1(%arg0: i32) -> (i32, i32) {
    %c0_i32 = arith.constant 0 : i32
    %c0_i32_0 = arith.constant 0 : i32
    %c0_i32_1 = arith.constant 0 : i32
    return %c0_i32, %c0_i32_0 : i32, i32
  }
  func.func @transform_2(%arg0: i32) -> (i32, i32) {
    %c0_i32 = arith.constant 0 : i32
    %c0_i32_0 = arith.constant 0 : i32
    %c0_i32_1 = arith.constant 0 : i32
    return %c0_i32, %c0_i32_0 : i32, i32
  }
  func.func @transform_3(%arg0: i32) -> (i32, i32) {
    %c0_i32 = arith.constant 0 : i32
    %c0_i32_0 = arith.constant 0 : i32
    %c0_i32_1 = arith.constant 0 : i32
    return %c0_i32, %c0_i32_0 : i32, i32
  }
  func.func @transform_4(%arg0: i32) -> (i32, i32) {
    %c0_i32 = arith.constant 0 : i32
    %c0_i32_0 = arith.constant 0 : i32
    return %arg0, %c0_i32 : i32, i32
  }
}

</mosaic_0001>

<llo_original>
// kernel: tpu_custom_call.1
$region0: #{tpu_custom_call.1}
  #allocation0 [shape = 'u32[]', space=smem, size = 0x4, offset = 0x4, fixed_abs, tag = 'smem constant byte address 0x4 - core index']
  #allocation1 [shape = 'u32[72,128]{1,0:T(1,128)}', space=vmem, size = 0x9000, scoped, tag = 'internal scratch']
  %s0 = inlined_call_operand.vmem [shape: f32[64,24], index: 0, kind: input, shape index: {}]
  %s1 = inlined_call_operand.vmem [shape: f32[24,128], index: 1, kind: input, shape index: {}]
  %s2 = inlined_call_operand.vmem [shape: f32[1,128], index: 2, kind: input, shape index: {}]
  %s3 = inlined_call_operand.vmem [shape: f32[1,128], index: 3, kind: input, shape index: {}]
  %s4 = inlined_call_operand.hbm [shape: f32[64,128], index: 4, kind: output, shape index: {}]
  %s5 = sld [smem:[#allocation0]]
  $region49: #{tpu_custom_call.1} parent=0
    _
  %s7 = ssub.s32 1, %s5
  %s8 = scalar_select 0, %s7, %s5
  $region1: #{tpu_custom_call.1} parent=0
    #allocation2 [shape = 'u8[32768]{0}', space=vmem, size = 0x8000, scoped, tag = 'output window, operand 0']
    #allocation3 [shape = 's32[2]{0}', space=sflag, size = 0x8, scoped, tag = 'scoped memory for tpu_custom_call.1']
    %9 = vsyncpa [#allocation3], 0
    %s10 = scalar_lea.sflag [#allocation3], 1
    %11 = vsyncpa %s10, 0
    loop: start=0, step=1, limit=4
    $region2: #{tpu_custom_call.1} parent=1 // loop_pre_header
      _
    $region3: #{tpu_custom_call.1} parent=1 // loop_header
      %s13 = sphi 0, %s17
      %p14 = scmp.ge.s32.totalorder %s13, 4
      %s23 = sphi 0, %s25
      %s26 = sphi 0, %s23
      %s27 = sphi 0, %s26
      %s43 = sphi 0, %s27
      %s47 = sphi 0, %s47
      %s49 = sphi 0, %s47
      %s50 = sphi 0, %s49
      %s64 = sphi 0, %s50
      %s68 = sphi 0, %s68
      %s70 = sphi 0, %s68
      %s71 = sphi 0, %s70
      %s85 = sphi 0, %s71
      %s89 = sphi 0, %s89
      %s91 = sphi 0, %s89
      %s92 = sphi 0, %s91
      %s106 = sphi 0, %s92
      %s112 = sphi 0, %s114
      %s115 = sphi 0, %s112
      %s116 = sphi 0, %s115
      %s132 = sphi 0, %s116
    $region4: #{tpu_custom_call.1} parent=1 // loop_header_branch
      %16 = sbr.rel (%p14) target = $region8
    $region5: #{tpu_custom_call.1} parent=1 // loop_body
      %s18 = ssub.s32 %s13, 1
      %s19 = ssub.s32 %s13, 2
      %s20 = sadd.s32 %s13, 1
      %s21 = ssub.s32 %s13, %s20
      %p22 = scmp.eq.s32.totalorder %s21, 0
      %s24 = sadd.s32 %s23, 1
      %s25 = scalar_select %p22, %s23, %s24
      %p28 = pneg %p22
      %p29 = scmp.eq.s32.totalorder %s13, 1
      %p30 = por %p28, %p29
      %p31 = scmp.ne.s32.totalorder %s23, %s26
      %p32 = scmp.eq.s32.totalorder %s13, 0
      %p33 = por %p31, %p32
      %p34 = scmp.ne.s32.totalorder %s23, %s26
      %p35 = scmp.eq.s32.totalorder %s18, 1
      %p36 = por %p34, %p35
      %p37 = scmp.ne.s32.totalorder %s26, %s27
      %p38 = scmp.eq.s32.totalorder %s18, 0
      %p39 = por %p37, %p38
      %p40 = scmp.ne.s32.totalorder %s26, %s27
      %p41 = scmp.eq.s32.totalorder %s19, 1
      %p42 = por %p40, %p41
      %p44 = scmp.ne.s32.totalorder %s27, %s43
      %p45 = scmp.eq.s32.totalorder %s19, 0
      %p46 = por %p44, %p45
      %s48 = sadd.s32 %s47, 1
      %p51 = scmp.eq.s32.totalorder %s13, 1
      %p52 = scmp.ne.s32.totalorder %s47, %s49
      %p53 = scmp.eq.s32.totalorder %s13, 0
      %p54 = por %p52, %p53
      %p55 = scmp.ne.s32.totalorder %s47, %s49
      %p56 = scmp.eq.s32.totalorder %s18, 1
      %p57 = por %p55, %p56
      %p58 = scmp.ne.s32.totalorder %s49, %s50
      %p59 = scmp.eq.s32.totalorder %s18, 0
      %p60 = por %p58, %p59
      %p61 = scmp.ne.s32.totalorder %s49, %s50
      %p62 = scmp.eq.s32.totalorder %s19, 1
      %p63 = por %p61, %p62
      %p65 = scmp.ne.s32.totalorder %s50, %s64
      %p66 = scmp.eq.s32.totalorder %s19, 0
      %p67 = por %p65, %p66
      %s69 = sadd.s32 %s68, 1
      %p72 = scmp.eq.s32.totalorder %s13, 1
      %p73 = scmp.ne.s32.totalorder %s68, %s70
      %p74 = scmp.eq.s32.totalorder %s13, 0
      %p75 = por %p73, %p74
      %p76 = scmp.ne.s32.totalorder %s68, %s70
      %p77 = scmp.eq.s32.totalorder %s18, 1
      %p78 = por %p76, %p77
      %p79 = scmp.ne.s32.totalorder %s70, %s71
      %p80 = scmp.eq.s32.totalorder %s18, 0
      %p81 = por %p79, %p80
      %p82 = scmp.ne.s32.totalorder %s70, %s71
      %p83 = scmp.eq.s32.totalorder %s19, 1
      %p84 = por %p82, %p83
      %p86 = scmp.ne.s32.totalorder %s71, %s85
      %p87 = scmp.eq.s32.totalorder %s19, 0
      %p88 = por %p86, %p87
      %s90 = sadd.s32 %s89, 1
      %p93 = scmp.eq.s32.totalorder %s13, 1
      %p94 = scmp.ne.s32.totalorder %s89, %s91
      %p95 = scmp.eq.s32.totalorder %s13, 0
      %p96 = por %p94, %p95
      %p97 = scmp.ne.s32.totalorder %s89, %s91
      %p98 = scmp.eq.s32.totalorder %s18, 1
      %p99 = por %p97, %p98
      %p100 = scmp.ne.s32.totalorder %s91, %s92
      %p101 = scmp.eq.s32.totalorder %s18, 0
      %p102 = por %p100, %p101
      %p103 = scmp.ne.s32.totalorder %s91, %s92
      %p104 = scmp.eq.s32.totalorder %s19, 1
      %p105 = por %p103, %p104
      %p107 = scmp.ne.s32.totalorder %s92, %s106
      %p108 = scmp.eq.s32.totalorder %s19, 0
      %p109 = por %p107, %p108
      %s110 = ssub.s32 %s13, %s20
      %p111 = scmp.eq.s32.totalorder %s110, 0
      %s113 = sadd.s32 %s112, 1
      %s114 = scalar_select %p111, %s112, %s113
      %p117 = pneg %p111
      %p118 = scmp.eq.s32.totalorder %s13, 1
      %p119 = por %p117, %p118
      %p120 = scmp.ne.s32.totalorder %s112, %s115
      %p121 = scmp.eq.s32.totalorder %s13, 0
      %p122 = por %p120, %p121
      %p123 = scmp.ne.s32.totalorder %s112, %s115
      %p124 = scmp.eq.s32.totalorder %s18, 1
      %p125 = por %p123, %p124
      %p126 = scmp.ne.s32.totalorder %s115, %s116
      %p127 = scmp.eq.s32.totalorder %s18, 0
      %p128 = por %p126, %p127
      %p129 = scmp.ne.s32.totalorder %s115, %s116
      %p130 = scmp.eq.s32.totalorder %s19, 1
      %p131 = por %p129, %p130
      %p133 = scmp.ne.s32.totalorder %s116, %s132
      %p134 = scmp.eq.s32.totalorder %s19, 0
      %p135 = por %p133, %p134
      %p136 = scmp.le.s32.totalorder 1, %s13
      %p137 = scmp.lt.s32.totalorder %s13, 3
      %p138 = pnand %p136, %p137
      %p139 = pneg %p138
      // Predicated region
      $region9: #{tpu_custom_call.1} parent=5 // pred_check
        _
      $region10: #{tpu_custom_call.1} parent=5 // pred_check_branch
        %141 = sbr.rel (%p138) target = $region12
      $region11: #{tpu_custom_call.1} parent=5 // pred_region
        %s142 = ssub.s32 %s13, 1
        // Predicated region
        $region13: #{tpu_custom_call.1} parent=11 // pred_check
          %p143 = pneg %p60
        $region14: #{tpu_custom_call.1} parent=11 // pred_check_branch
          %145 = sbr.rel (%p143) target = $region16
        $region15: #{tpu_custom_call.1} parent=11 // pred_region
          _
        $region16: #{tpu_custom_call.1} parent=11 // pred_fallthru
          _
        // Predicated region
        $region17: #{tpu_custom_call.1} parent=11 // pred_check
          %p146 = pneg %p81
        $region18: #{tpu_custom_call.1} parent=11 // pred_check_branch
          %148 = sbr.rel (%p146) target = $region20
        $region19: #{tpu_custom_call.1} parent=11 // pred_region
          _
        $region20: #{tpu_custom_call.1} parent=11 // pred_fallthru
          _
        // Predicated region
        $region21: #{tpu_custom_call.1} parent=11 // pred_check
          %p149 = pneg %p102
        $region22: #{tpu_custom_call.1} parent=11 // pred_check_branch
          %151 = sbr.rel (%p149) target = $region24
        $region23: #{tpu_custom_call.1} parent=11 // pred_region
          _
        $region24: #{tpu_custom_call.1} parent=11 // pred_fallthru
          _
      $region12: #{tpu_custom_call.1} parent=5 // pred_fallthru
        _
      %p152 = scmp.lt.s32.totalorder %s13, 2
      // Predicated region
      $region25: #{tpu_custom_call.1} parent=5 // pred_check
        %p153 = pneg %p152
      $region26: #{tpu_custom_call.1} parent=5 // pred_check_branch
        %155 = sbr.rel (%p153) target = $region28
      $region27: #{tpu_custom_call.1} parent=5 // pred_region
        // Predicated region
        $region29: #{tpu_custom_call.1} parent=27 // pred_check
          %p156 = pneg %p33
        $region30: #{tpu_custom_call.1} parent=27 // pred_check_branch
          %158 = sbr.rel (%p156) target = $region32
        $region31: #{tpu_custom_call.1} parent=27 // pred_region
          %s159 = smul.u32 4, %s13
          %p160 = scmp.lt.s32.totalorder %s159, 7
          %s161 = scalar_select %p160, %s159, 7
          %s162 = smul.addr %s161, 8
          %s163 = scalar_lea.vmem %s0, %s162
          %s164 = smul.u32 4, %s13
        $region32: #{tpu_custom_call.1} parent=27 // pred_fallthru
          _
      $region28: #{tpu_custom_call.1} parent=5 // pred_fallthru
        _
      %p165 = scmp.le.s32.totalorder 1, %s13
      %p166 = scmp.lt.s32.totalorder %s13, 3
      %p167 = pnand %p165, %p166
      %p168 = pneg %p167
      // Predicated region
      $region33: #{tpu_custom_call.1} parent=5 // pred_check
        _
      $region34: #{tpu_custom_call.1} parent=5 // pred_check_branch
        %170 = sbr.rel (%p167) target = $region36
      $region35: #{tpu_custom_call.1} parent=5 // pred_region
        %s171 = ssub.s32 %s13, 1
        %s172 = smul.u32 4, %s18
        %p173 = scmp.lt.s32.totalorder %s172, 7
        %s174 = scalar_select %p173, %s172, 7
        %s175 = smul.addr %s174, 8
        %s176 = scalar_lea.vmem %s0, %s175
        %p177 = pneg %p39
        %p178 = pneg %p36
        %p179 = pneg %p60
        %p180 = pneg %p57
        %p181 = pneg %p81
        %p182 = pneg %p78
        %p183 = pneg %p102
        %p184 = pneg %p99
        %p185 = pneg %p128
        %p186 = pneg %p125
        %s187 = sand.u32 %s115, 1
        %s188 = scalar_lea.sflag [#allocation3], %s187
        %s189 = sand.u32 %s115, 1
        %s190 = smul.addr %s189, 32
        %s191 = scalar_lea.vmem [#allocation2], %s190
        %s192 = smul.u32 4, %s18
        %p193 = scmp.lt.s32.totalorder %s192, 7
        %s194 = scalar_select %p193, %s192, 7
        %s195 = smul.addr %s194, 8
        %s196 = scalar_lea.vmem %s0, %s195
        %s197 = smul.u32 4, %s18
        %s198 = smul.u32 4, %s18
        %v199 = vld [vmem:[%s196] sm:$0xff]
        %v200 = vld [vmem:[%s196 + $0x8] sm:$0xff]
        %v201 = vld [vmem:[%s196 + $0x10] sm:$0xff]
        %v202 = vld [vmem:[%s196 + $0x18] sm:$0xff]
        %v203 = vld [vmem:[%s1] sm:$0xff]
        %v204 = vld [vmem:[%s1 + $0x8] sm:$0xff]
        %v205 = vld [vmem:[%s1 + $0x10] sm:$0xff]
        %vm206 = vcmask 195584
        %v208 = vsel %vm206, %v199, 0
        %v211 = vsel %vm206, %v200, 0
        %v214 = vsel %vm206, %v201, 0
        %v217 = vsel %vm206, %v202, 0
        %219 = vmatpush.msra.mxu0 0.0
        %220 = vmatpush.msra.mxu0 0.0
        %221 = vmatpush.msra.mxu0 0.0
        %222 = vmatpush.msra.mxu0 0.0
        %223 = vmatpush.msra.mxu0 0.0
        %224 = vmatpush.msra.mxu0 0.0
        %225 = vmatpush.msra.mxu0 0.0
        %226 = vmatpush.msra.mxu0 0.0
        %227 = vmatpush.msra.mxu0 0.0
        %228 = vmatpush.msra.mxu0 0.0
        %229 = vmatpush.msra.mxu0 0.0
        %230 = vmatpush.msra.mxu0 0.0
        %231 = vmatpush.msra.mxu0 0.0
        %232 = vmatpush.msra.mxu0 %v205
        %233 = vmatpush.msra.mxu0 %v204
        %234 = vmatpush.msra.mxu0 %v203
        %235 = vmatmul.f32.gmra.mxu0 %v208
        %v236 = vpop.f32.mrf.mxu0
        %v237 = vadd.f32 0.0, %v236
        %238 = vmatmul.f32.gmra.mxu0 %v211
        %v239 = vpop.f32.mrf.mxu0
        %v240 = vadd.f32 0.0, %v239
        %241 = vmatmul.f32.gmra.mxu0 %v214
        %v242 = vpop.f32.mrf.mxu0
        %v243 = vadd.f32 0.0, %v242
        %244 = vmatmul.f32.gmra.mxu0 %v217
        %v245 = vpop.f32.mrf.mxu0
        %v246 = vadd.f32 0.0, %v245
        %247 = vdwg.mxu0
        %v248 = vld [vmem:[%s2] sm:$0x1]
        %v250 = vperm.slane %v248, 0
        %v252 = vmul.f32 %v237, %v250
        %v253 = vmul.f32 %v240, %v250
        %v254 = vmul.f32 %v243, %v250
        %v255 = vmul.f32 %v246, %v250
        %v256 = vld [vmem:[%s3] sm:$0x1]
        %v258 = vperm.slane %v256, 0
        %v260 = vadd.f32 %v252, %v258
        %v261 = vadd.f32 %v253, %v258
        %v262 = vadd.f32 %v254, %v258
        %v263 = vadd.f32 %v255, %v258
        %vm264 = vcmp.gt.f32.partialorder %v260, 0.0
        %vm265 = vcmp.gt.f32.partialorder %v261, 0.0
        %vm266 = vcmp.gt.f32.partialorder %v262, 0.0
        %vm267 = vcmp.gt.f32.partialorder %v263, 0.0
        %v268 = vmin.f32 %v260, 0.0
        %v269 = vmin.f32 %v261, 0.0
        %v270 = vmin.f32 %v262, 0.0
        %v271 = vmin.f32 %v263, 0.0
        %v272 = vmul.f32 %v268, 1.442695
        %v273 = vpow.pop %v272
        %v274 = vmul.f32 %v269, 1.442695
        %v275 = vpow.pop %v274
        %v276 = vmul.f32 %v270, 1.442695
        %v277 = vpow.pop %v276
        %v278 = vmul.f32 %v271, 1.442695
        %v279 = vpow.pop %v278
        %v280 = vsub.f32 %v273, 1.0
        %v281 = vsub.f32 %v275, 1.0
        %v282 = vsub.f32 %v277, 1.0
        %v283 = vsub.f32 %v279, 1.0
        %v284 = vmul.f32 %v280, 1.6732632
        %v285 = vmul.f32 %v281, 1.6732632
        %v286 = vmul.f32 %v282, 1.6732632
        %v287 = vmul.f32 %v283, 1.6732632
        %v288 = vsel %vm264, %v260, %v284
        %v289 = vsel %vm265, %v261, %v285
        %v290 = vsel %vm266, %v262, %v286
        %v291 = vsel %vm267, %v263, %v287
        %v292 = vmul.f32 %v288, 1.050701
        %v293 = vmul.f32 %v289, 1.050701
        %v294 = vmul.f32 %v290, 1.050701
        %v295 = vmul.f32 %v291, 1.050701
        %296 = vst [vmem:[%s191] sm:$0xff] %v292
        %297 = vst [vmem:[%s191 + $0x8] sm:$0xff] %v293
        %298 = vst [vmem:[%s191 + $0x10] sm:$0xff] %v294
        %299 = vst [vmem:[%s191 + $0x18] sm:$0xff] %v295
        %s300 = sand.u32 %s115, 1
        %s301 = scalar_lea.sflag [#allocation3], %s300
        %s302 = sand.u32 %s115, 1
        %s303 = smul.addr %s302, 32
        %s304 = scalar_lea.vmem [#allocation2], %s303
        // Predicated region
        $region37: #{tpu_custom_call.1} parent=35 // pred_check
          %p305 = pneg %p125
        $region38: #{tpu_custom_call.1} parent=35 // pred_check_branch
          %307 = sbr.rel (%p305) target = $region40
        $region39: #{tpu_custom_call.1} parent=35 // pred_region
          %s308 = smul.u32 4, %s18
          %310 = vsyncadd %s301, 0
          %s311 = smul.addr %s308, 8
          %s312 = scalar_lea.hbm %s4, %s311
          %s313 = sshll.u32 %s304, 4
          %s314 = int_to_ptr.vmem [resolvable:$true] %s313
          %s315 = sshll.u32 %s312, 4
          %s316 = int_to_ptr.hbm [resolvable:$true] %s315
          %321 = dma.vmem_to_hbm [thread:$0]  %s314, 512, %s316, %s301, 128, 128, 8
        $region40: #{tpu_custom_call.1} parent=35 // pred_fallthru
          _
      $region36: #{tpu_custom_call.1} parent=5 // pred_fallthru
        _
      %p322 = scmp.le.s32.totalorder 2, %s13
      // Predicated region
      $region41: #{tpu_custom_call.1} parent=5 // pred_check
        %p323 = pneg %p322
      $region42: #{tpu_custom_call.1} parent=5 // pred_check_branch
        %325 = sbr.rel (%p323) target = $region44
      $region43: #{tpu_custom_call.1} parent=5 // pred_region
        %s326 = ssub.s32 %s13, 2
        // Predicated region
        $region45: #{tpu_custom_call.1} parent=43 // pred_check
          %p327 = pneg %p131
        $region46: #{tpu_custom_call.1} parent=43 // pred_check_branch
          %329 = sbr.rel (%p327) target = $region48
        $region47: #{tpu_custom_call.1} parent=43 // pred_region
          %s330 = sand.u32 %s116, 1
          %s331 = scalar_lea.sflag [#allocation3], %s330
          %s332 = sand.u32 %s116, 1
          %s333 = smul.addr %s332, 32
          %s334 = scalar_lea.vmem [#allocation2], %s333
          %336 = dma.done %s331, 512
        $region48: #{tpu_custom_call.1} parent=43 // pred_fallthru
          _
      $region44: #{tpu_custom_call.1} parent=5 // pred_fallthru
        _
    $region6: #{tpu_custom_call.1} parent=1 // loop_footer
      %s17 = sadd.s32 1, %s13
    $region7: #{tpu_custom_call.1} parent=1 // loop_footer_branch
      %12 = sbr.rel target = $region3
    $region8: #{tpu_custom_call.1} parent=1 // loop_exit
      _
    %337 = vsyncpa [#allocation3], 1
    %s338 = scalar_lea.sflag [#allocation3], 1
    %339 = vsyncpa %s338, 1

</llo_original>
